<compile_context>
chip_gen: v7x
topology: tpu7x:2x2x1
jax: 0.10.0
libtpu: 0.0.40
codegen_flags: <defaults>
</compile_context>

<pallas_src>
import math

import jax
import jax.numpy as jnp
from jax.experimental import pallas as pl
from jax.experimental.pallas import tpu as pltpu


def _round_up(x, m):
    return ((x + m - 1) // m) * m


def _vmem_capacity_bytes():
    """VMEM capacity (bytes); conservative fallback if the query fails."""
    try:
        info = pltpu.get_tpu_info()
        cap = getattr(info, "vmem_capacity_bytes", None)
        if cap:
            return int(cap)
    except Exception:
        pass
    try:
        kind = jax.devices()[0].device_kind.lower()
    except Exception:
        kind = ""
    if "v7" in kind:
        return 64 * 1024 * 1024
    if any(v in kind for v in ("v4", "v5", "v6")):
        return 128 * 1024 * 1024
    return 64 * 1024 * 1024          # unknown part: assume the small budget


# ----------------------------------------------------------------------------
# Pallas kernels: grouped, K/N/M-tiled matmul, f32 accumulation, fused bias.
#   A (patches): (Nb, G, Kp, M)   block (1, 1, tk, tm)
#   W (weights): (G, Ogp, Kp)     block (1, tn, tk)
#   bias (f32):  (G, Ogp, 1)      block (1, tn, 1)
#   out:         (Nb, G, Ogp, M)  block (1, 1, tn, tm)  (lane dim = spatial)
# Grid = (G, Nb, gm, gn, gk); group outermost -> weights resident across
# batches / M tiles; K (reduction) innermost.
# ----------------------------------------------------------------------------
def _make_conv_mm_kernel(single_k_step):
    if single_k_step:
        # Common case (gk == 1): no scratch, no zero store, bias fused into
        # the single lane-dense store.
        def kernel(a_ref, w_ref, b_ref, o_ref):
            acc = jnp.dot(w_ref[0], a_ref[0, 0],
                          preferred_element_type=jnp.float32)
            o_ref[0, 0] = (acc + b_ref[0]).astype(o_ref.dtype)
        return kernel

    def kernel(a_ref, w_ref, b_ref, o_ref, acc_ref):
        k = pl.program_id(4)

        @pl.when(k == 0)
        def _init():
            # Initialise the accumulator with the bias -> no finalize add.
            acc_ref[...] = jnp.broadcast_to(b_ref[0], acc_ref.shape)

        acc_ref[...] += jnp.dot(w_ref[0], a_ref[0, 0],
                                preferred_element_type=jnp.float32)

        @pl.when(k == pl.num_programs(4) - 1)
        def _finalize():
            o_ref[0, 0] = acc_ref[...].astype(o_ref.dtype)

    return kernel


def _matmul_pallas(patches, wmat, b, out_dtype, Mdim, Ogp, Kp, tm, tn, tk):
    Nb, G = patches.shape[0], patches.shape[1]
    gm = pl.cdiv(Mdim, tm)      # M remainder handled by a masked partial block
    gn = Ogp // tn              # exact by construction
    gk = Kp // tk               # exact by construction
    grid = (G, Nb, gm, gn, gk)
    single_k = (gk == 1)

    # Advisory cost estimate (accounts for the gn x patches re-read that can
    # only happen when the K axis is also tiled).
    flops = 2 * Nb * G * Mdim * Kp * Ogp
    a_rereads = gn if gk > 1 else 1
    w_rereads = 1 if (gn == 1 and gk == 1) else Nb * gm
    bytes_accessed = (patches.size * patches.dtype.itemsize * a_rereads
                      + wmat.size * wmat.dtype.itemsize * w_rereads
                      + Nb * G * Ogp * Mdim * jnp.dtype(out_dtype).itemsize
                      + b.size * b.dtype.itemsize)

    scratch = [] if single_k else [pltpu.VMEM((tn, tm), jnp.float32)]

    vmem_cap = _vmem_capacity_bytes()
    vmem_limit = (96 if vmem_cap >= 100 * 1024 * 1024 else 48) * 1024 * 1024

    return pl.pallas_call(
        _make_conv_mm_kernel(single_k),
        out_shape=jax.ShapeDtypeStruct((Nb, G, Ogp, Mdim), out_dtype),
        grid_spec=pltpu.PrefetchScalarGridSpec(
            num_scalar_prefetch=0,
            grid=grid,
            in_specs=[
                pl.BlockSpec((1, 1, tk, tm), lambda g, n, i, j, k: (n, g, k, i)),
                pl.BlockSpec((1, tn, tk), lambda g, n, i, j, k: (g, j, k)),
                pl.BlockSpec((1, tn, 1), lambda g, n, i, j, k: (g, j, 0)),
            ],
            out_specs=pl.BlockSpec((1, 1, tn, tm),
                                   lambda g, n, i, j, k: (n, g, j, i)),
            scratch_shapes=scratch,
        ),
        compiler_params=pltpu.CompilerParams(
            # gm is a large "parallel" axis for 2-TC sharding on v7x even when
            # batch == 1; only the K reduction must stay "arbitrary".
            dimension_semantics=("parallel", "parallel", "parallel",
                                 "parallel", "arbitrary"),
            vmem_limit_bytes=vmem_limit,
        ),
        cost_estimate=pl.CostEstimate(flops=flops, transcendentals=0,
                                      bytes_accessed=bytes_accessed),
    )(patches, wmat, b)


# ----------------------------------------------------------------------------
# Conv2d forward (F.conv2d semantics): x NCHW, weight OIHW -> NCHW output.
# ----------------------------------------------------------------------------
def conv2d_pallas(x, weight, bias, stride=1, padding=0, dilation=1, groups=1,
                  compute_dtype=jnp.bfloat16):
    out_dtype = x.dtype
    N, C, H, Wi = x.shape
    O, Cg, K, _ = weight.shape
    assert C % groups == 0 and O % groups == 0 and C // groups == Cg
    G = groups
    Og = O // G
    OH = (H + 2 * padding - dilation * (K - 1) - 1) // stride + 1
    OW = (Wi + 2 * padding - dilation * (K - 1) - 1) // stride + 1
    M = OH * OW
    Kg = Cg * K * K

    cdt = jnp.dtype(compute_dtype if compute_dtype is not None else jnp.bfloat16)

    # ---- bf16 operands by default (cast BEFORE im2col so the materialized
    # ---- patches tensor is half the bytes); f32 accumulation in-kernel. ----
    xc = x.astype(cdt)
    if padding > 0:
        xc = jnp.pad(xc, ((0, 0), (0, 0), (padding, padding),
                          (padding, padding)))

    # ---- channel-major im2col: (N, G, Cg*K*K, OH*OW), reduction order
    # ---- (kh, kw, cg) matching the weight flattening below.  Built with a
    # ---- single stack (no per-group Python loop -> no trace blowup for
    # ---- large-group / depthwise convs). ------------------------------------
    cols = []
    for kh in range(K):
        for kw in range(K):
            h0, w0 = kh * dilation, kw * dilation
            cols.append(xc[:, :, h0:h0 + stride * OH:stride,
                                  w0:w0 + stride * OW:stride])
    col = jnp.stack(cols, axis=1)                       # (N, K*K, C, OH, OW)
    col = col.reshape(N, K * K, G, Cg, M)
    patches = col.transpose(0, 2, 1, 3, 4).reshape(N, G, Kg, M)   # (N,G,Kg,M)

    # ---- fold batch into the lane axis when the per-image spatial extent is
    # ---- not lane-dense (M % 128 != 0): dense vst + fewer grid steps. -------
    fold_batch = (N > 1) and (M % 128 != 0)
    if fold_batch:
        patches = patches.transpose(1, 2, 0, 3).reshape(1, G, Kg, N * M)
        Nb, Mdim = 1, N * M
    else:
        Nb, Mdim = N, M

    # ---- weight / bias prep (group-major, (kh, kw, cg) flattening) ----------
    wmat = weight.reshape(G, Og, Cg, K, K).transpose(0, 1, 3, 4, 2)
    wmat = wmat.reshape(G, Og, Kg).astype(cdt)
    if bias is None:
        b = jnp.zeros((G, Og, 1), jnp.float32)
    else:
        b = bias.reshape(G, Og, 1).astype(jnp.float32)

    # ---- tile sizes derived from VMEM capacity and operand width ------------
    vmem_cap = _vmem_capacity_bytes()
    big_vmem = vmem_cap >= 100 * 1024 * 1024
    itemsize = cdt.itemsize

    # K (reduction): a single full-extent step whenever it fits comfortably
    # (common case -> scratch-free kernel); otherwise 128-multiple tiles.
    kg_full_max = 4096 if itemsize <= 2 else (2048 if big_vmem else 1024)
    if Kg <= kg_full_max:
        Kp, tk = Kg, Kg
    else:
        Kp = _round_up(Kg, 128)
        tk = next(c for c in (2048, 1024, 512, 256, 128)
                  if c <= kg_full_max and Kp % c == 0)
        if Kp != Kg:
            patches = jnp.pad(patches, ((0, 0), (0, 0), (0, Kp - Kg), (0, 0)))
            wmat = jnp.pad(wmat, ((0, 0), (0, 0), (0, Kp - Kg)))

    # N (out channels per group): full extent when small (keeps the output
    # lane-dense layout and avoids padded channels); on big-VMEM parts use
    # tn=512 so gn stays 1 and the patches tensor is never re-read.
    if Og <= 512:
        Ogp, tn = Og, Og
    else:
        Ogp = _round_up(Og, 128)
        tn_pref = 512 if big_vmem else 256
        tn = next(c for c in (tn_pref, 256, 128) if Ogp % c == 0)
        if Ogp != Og:
            wmat = jnp.pad(wmat, ((0, 0), (0, Ogp - Og), (0, 0)))
            b = jnp.pad(b, ((0, 0), (0, Ogp - Og), (0, 0)))

    # M (spatial lanes): large lane-dense tiles; remainder is a masked partial
    # block (no padding copy of the big patches array).  bf16 operands allow
    # tm=512 even within the 64 MiB v7x budget.
    tm_pref = 512 if (itemsize <= 2 or big_vmem) else 256
    if Mdim < 128:
        tm = Mdim
    else:
        tm = min(tm_pref, (Mdim // 128) * 128)

    out = _matmul_pallas(patches, wmat, b, out_dtype, Mdim, Ogp, Kp, tm, tn, tk)
    if Ogp != Og:
        out = out[:, :, :Og, :]

    if fold_batch:
        # (1, G, Og, N*M) -> (N, G, Og, OH, OW) -> (N, O, OH, OW)
        out = out.reshape(G, Og, N, OH, OW).transpose(2, 0, 1, 3, 4)
        return out.reshape(N, O, OH, OW)
    # (N, G, Og, OH*OW) -> (N, O, OH, OW): pure reshape, no transpose.
    return out.reshape(N, O, OH, OW)


# ----------------------------------------------------------------------------
# Deterministic parameter init (mirrors reset_parameters: kaiming_uniform a=√5)
# ----------------------------------------------------------------------------
def init_conv2d_params(key, in_channels, out_channels, kernel_size,
                       groups=1, use_bias=True, dtype=jnp.float32):
    Cg = in_channels // groups
    fan_in = Cg * kernel_size * kernel_size
    bound = 1.0 / math.sqrt(fan_in)
    kw_key, kb_key = jax.random.split(key)
    weight = jax.random.uniform(
        kw_key, (out_channels, Cg, kernel_size, kernel_size),
        minval=-bound, maxval=bound, dtype=dtype)
    bias = None
    if use_bias:
        bias = jax.random.uniform(kb_key, (out_channels,),
                                  minval=-bound, maxval=bound, dtype=dtype)
    return weight, bias


def _ref_conv(x, weight, bias, stride, padding, dilation, groups):
    out = jax.lax.conv_general_dilated(
        x, weight, (stride, stride), [(padding, padding), (padding, padding)],
        rhs_dilation=(dilation, dilation), feature_group_count=groups,
        dimension_numbers=("NCHW", "OIHW", "NCHW"))
    if bias is not None:
        out = out + bias[None, :, None, None]
    return out


if __name__ == "__main__":
    key = jax.random.PRNGKey(0)
    kx, kp, kx2, kp2 = jax.random.split(key, 4)

    # --- test 1: standard conv, bias, default bf16 operands / f32 accumulate -
    N, C, H, W = 2, 4, 16, 16
    O, K = 8, 3
    x = jax.random.normal(kx, (N, C, H, W), dtype=jnp.float32)
    weight, bias = init_conv2d_params(kp, C, O, K, groups=1, use_bias=True)
    out = jax.block_until_ready(conv2d_pallas(x, weight, bias, 1, 1, 1, 1))
    ref = _ref_conv(x, weight, bias, 1, 1, 1, 1)
    assert out.shape == ref.shape == (N, O, H, W)
    assert jnp.allclose(out, ref, atol=1e-1, rtol=1e-1)

    # --- test 2: exact f32 compute path (tight tolerance) --------------------
    out_f32 = jax.block_until_ready(
        conv2d_pallas(x, weight, bias, 1, 1, 1, 1, compute_dtype=jnp.float32))
    assert jnp.allclose(out_f32, ref, atol=1e-4, rtol=1e-4)

    # --- test 3: grouped, strided, no bias; exercises the batch-fold path ----
    C2, O2, g2 = 8, 8, 2
    x2 = jax.random.normal(kx2, (N, C2, H, W), dtype=jnp.float32)
    w2, _ = init_conv2d_params(kp2, C2, O2, K, groups=g2, use_bias=False)
    out2 = jax.block_until_ready(
        conv2d_pallas(x2, w2, None, 2, 1, 1, g2, compute_dtype=jnp.float32))
    ref2 = _ref_conv(x2, w2, None, 2, 1, 1, g2)
    assert out2.shape == ref2.shape == (N, O2, 8, 8)
    assert jnp.allclose(out2, ref2, atol=1e-4, rtol=1e-4)

    # --- test 4: dilated conv; exercises masked partial M tiles + fold -------
    out3 = jax.block_until_ready(
        conv2d_pallas(x, weight, bias, 1, 1, 2, 1, compute_dtype=jnp.float32))
    ref3 = _ref_conv(x, weight, bias, 1, 1, 2, 1)
    assert out3.shape == ref3.shape == (N, O, 14, 14)
    assert jnp.allclose(out3, ref3, atol=1e-4, rtol=1e-4)

    print("KERNEL_OK")
</pallas_src>

<mosaic_0001>
module attributes {stable_mosaic.version = 11 : i64} {
  func.func @kernel(%arg0: i32, %arg1: i32, %arg2: i32, %arg3: i32, %arg4: i32, %arg5: memref<1x1x36x256xbf16, #tpu.memory_space<vmem>>, %arg6: memref<1x8x36xbf16, #tpu.memory_space<vmem>>, %arg7: memref<1x8x1xf32, #tpu.memory_space<vmem>>, %arg8: memref<1x1x8x256xf32, #tpu.memory_space<vmem>>) attributes {dimension_semantics = [#tpu.dimension_semantics<parallel>, #tpu.dimension_semantics<parallel>, #tpu.dimension_semantics<parallel>, #tpu.dimension_semantics<parallel>, #tpu.dimension_semantics<arbitrary>], iteration_bounds = array<i64: 1, 2, 1, 1, 1>, scalar_prefetch = 0 : i64, scratch_operands = 0 : i64, tpu.core_type = #tpu.core_type<tc>, window_params = [{transform_indices = @transform_0, window_bounds = array<i64: 1, 1, 36, 256>}, {transform_indices = @transform_1, window_bounds = array<i64: 1, 8, 36>}, {transform_indices = @transform_2, window_bounds = array<i64: 1, 8, 1>}, {transform_indices = @transform_3, window_bounds = array<i64: 1, 1, 8, 256>}]} {
    %c0 = arith.constant 0 : index
    %c0_0 = arith.constant 0 : index
    %c0_1 = arith.constant 0 : index
    %0 = vector.load %arg6[%c0, %c0_0, %c0_1] : memref<1x8x36xbf16, #tpu.memory_space<vmem>>, vector<1x8x36xbf16>
    %1 = vector.shape_cast %0 : vector<1x8x36xbf16> to vector<8x36xbf16>
    %c0_2 = arith.constant 0 : index
    %c0_3 = arith.constant 0 : index
    %c0_4 = arith.constant 0 : index
    %c0_5 = arith.constant 0 : index
    %2 = vector.load %arg5[%c0_2, %c0_3, %c0_4, %c0_5] : memref<1x1x36x256xbf16, #tpu.memory_space<vmem>>, vector<1x1x36x256xbf16>
    %3 = vector.shape_cast %2 : vector<1x1x36x256xbf16> to vector<36x256xbf16>
    %cst = arith.constant dense<0.000000e+00> : vector<8x256xf32>
    %4 = tpu.matmul %1, %3, %cst {dimension_numbers = #tpu.dot_dimension_numbers<[1], [0], [0], [1], [0, 0, 1, 1], [], []>} : vector<8x36xbf16>, vector<36x256xbf16>, vector<8x256xf32> -> vector<8x256xf32>
    %c0_6 = arith.constant 0 : index
    %c0_7 = arith.constant 0 : index
    %c0_8 = arith.constant 0 : index
    %5 = vector.load %arg7[%c0_6, %c0_7, %c0_8] : memref<1x8x1xf32, #tpu.memory_space<vmem>>, vector<1x8x1xf32>
    %6 = vector.shape_cast %5 : vector<1x8x1xf32> to vector<8x1xf32>
    %7 = vector.broadcast %6 : vector<8x1xf32> to vector<8x256xf32>
    %8 = arith.addf %4, %7 : vector<8x256xf32>
    %c0_9 = arith.constant 0 : index
    %c0_10 = arith.constant 0 : index
    %c0_11 = arith.constant 0 : index
    %c0_12 = arith.constant 0 : index
    %9 = vector.load %arg8[%c0_9, %c0_10, %c0_11, %c0_12] : memref<1x1x8x256xf32, #tpu.memory_space<vmem>>, vector<1x1x8x256xf32>
    %10 = vector.shape_cast %9 : vector<1x1x8x256xf32> to vector<8x256xf32>
    %11 = vector.shape_cast %8 : vector<8x256xf32> to vector<1x1x8x256xf32>
    tpu.vector_store %arg8[%c0_9, %c0_10, %c0_11, %c0_12], %11 {strides = array<i32>} : memref<1x1x8x256xf32, #tpu.memory_space<vmem>>, vector<1x1x8x256xf32>,
    return
  }
  func.func @transform_0(%arg0: i32, %arg1: i32, %arg2: i32, %arg3: i32, %arg4: i32) -> (i32, i32, i32, i32) {
    %c0_i32 = arith.constant 0 : i32
    return %arg1, %arg0, %arg4, %arg2 : i32, i32, i32, i32
  }
  func.func @transform_1(%arg0: i32, %arg1: i32, %arg2: i32, %arg3: i32, %arg4: i32) -> (i32, i32, i32) {
    %c0_i32 = arith.constant 0 : i32
    return %arg0, %arg3, %arg4 : i32, i32, i32
  }
  func.func @transform_2(%arg0: i32, %arg1: i32, %arg2: i32, %arg3: i32, %arg4: i32) -> (i32, i32, i32) {
    %c0_i32 = arith.constant 0 : i32
    %c0_i32_0 = arith.constant 0 : i32
    return %arg0, %arg3, %c0_i32 : i32, i32, i32
  }
  func.func @transform_3(%arg0: i32, %arg1: i32, %arg2: i32, %arg3: i32, %arg4: i32) -> (i32, i32, i32, i32) {
    %c0_i32 = arith.constant 0 : i32
    return %arg1, %arg0, %arg3, %arg2 : i32, i32, i32, i32
  }
}

</mosaic_0001>

<llo_original>
// kernel: tpu_custom_call.1
$region0: #{tpu_custom_call.1}
  #allocation0 [shape = 'u32[]', space=smem, size = 0x4, offset = 0x4, fixed_abs, tag = 'smem constant byte address 0x4 - core index']
  #allocation1 [shape = 'u32[144,128]{1,0:T(1,128)}', space=vmem, size = 0x12000, scoped, tag = 'internal scratch']
  %s0 = inlined_call_operand.vmem [shape: bf16[2,1,36,256], index: 0, kind: input, shape index: {}]
  %s1 = inlined_call_operand.vmem [shape: bf16[1,8,36], index: 1, kind: input, shape index: {}]
  %s2 = inlined_call_operand.vmem [shape: f32[1,8,1], index: 2, kind: input, shape index: {}]
  %s3 = inlined_call_operand.hbm [shape: f32[2,1,8,256], index: 3, kind: output, shape index: {}]
  %s4 = sld [smem:[#allocation0]]
  $region45: #{tpu_custom_call.1} parent=0
    _
  %s6 = ssub.s32 1, %s4
  %s7 = scalar_select 0, %s6, %s4
  $region1: #{tpu_custom_call.1} parent=0
    #allocation2 [shape = 'u8[16384]{0}', space=vmem, size = 0x4000, scoped, tag = 'output window, operand 0']
    #allocation3 [shape = 's32[2]{0}', space=sflag, size = 0x8, scoped, tag = 'scoped memory for tpu_custom_call.1']
    %8 = vsyncpa [#allocation3], 0
    %s9 = scalar_lea.sflag [#allocation3], 1
    %10 = vsyncpa %s9, 0
    loop: start=0, step=1, limit=4
    $region2: #{tpu_custom_call.1} parent=1 // loop_pre_header
      _
    $region3: #{tpu_custom_call.1} parent=1 // loop_header
      %s12 = sphi 0, %s16
      %p13 = scmp.ge.s32.totalorder %s12, 4
      %s19 = sphi 0, %s52
      %s20 = sphi 0, %s48
      %s21 = sphi 0, %s44
      %s22 = sphi 0, %s40
      %s23 = sphi 0, %s36
      %s24 = sphi 0, %s19
      %s25 = sphi 0, %s20
      %s26 = sphi 0, %s21
      %s27 = sphi 0, %s22
      %s28 = sphi 0, %s23
      %s29 = sphi 0, %s24
      %s30 = sphi 0, %s25
      %s31 = sphi 0, %s26
      %s32 = sphi 0, %s27
      %s33 = sphi 0, %s28
      %s61 = sphi 0, %s63
      %s64 = sphi 0, %s61
      %s65 = sphi 0, %s64
      %s81 = sphi 0, %s65
      %s91 = sphi 0, %s93
      %s94 = sphi 0, %s91
      %s95 = sphi 0, %s94
      %s111 = sphi 0, %s95
      %s119 = sphi 0, %s121
      %s122 = sphi 0, %s119
      %s123 = sphi 0, %s122
      %s139 = sphi 0, %s123
      %s151 = sphi 0, %s153
      %s154 = sphi 0, %s151
      %s155 = sphi 0, %s154
      %s171 = sphi 0, %s155
    $region4: #{tpu_custom_call.1} parent=1 // loop_header_branch
      %15 = sbr.rel (%p13) target = $region8
    $region5: #{tpu_custom_call.1} parent=1 // loop_body
      %s17 = ssub.s32 %s12, 1
      %s18 = ssub.s32 %s12, 2
      %s34 = sadd.s32 1, %s23
      %p35 = scmp.ge.s32.totalorder %s34, 1
      %s36 = scalar_select %p35, 0, %s34
      %s37 = sadd.s32 1, %s22
      %s38 = scalar_select %p35, %s37, %s22
      %p39 = scmp.ge.s32.totalorder %s38, 1
      %s40 = scalar_select %p39, 0, %s38
      %s41 = sadd.s32 1, %s21
      %s42 = scalar_select %p39, %s41, %s21
      %p43 = scmp.ge.s32.totalorder %s42, 1
      %s44 = scalar_select %p43, 0, %s42
      %s45 = sadd.s32 1, %s20
      %s46 = scalar_select %p43, %s45, %s20
      %p47 = scmp.ge.s32.totalorder %s46, 2
      %s48 = scalar_select %p47, 0, %s46
      %s49 = sadd.s32 1, %s19
      %s50 = scalar_select %p47, %s49, %s19
      %p51 = scmp.ge.s32.totalorder %s50, 1
      %s52 = scalar_select %p51, 0, %s50
      %s53 = ssub.s32 %s20, %s48
      %s54 = ssub.s32 %s19, %s52
      %s55 = sor.u32 %s53, %s54
      %s56 = ssub.s32 %s23, %s36
      %s57 = sor.u32 %s55, %s56
      %s58 = ssub.s32 %s21, %s44
      %s59 = sor.u32 %s57, %s58
      %p60 = scmp.eq.s32.totalorder %s59, 0
      %s62 = sadd.s32 %s61, 1
      %s63 = scalar_select %p60, %s61, %s62
      %p66 = pneg %p60
      %p67 = scmp.eq.s32.totalorder %s12, 1
      %p68 = por %p66, %p67
      %p69 = scmp.ne.s32.totalorder %s61, %s64
      %p70 = scmp.eq.s32.totalorder %s12, 0
      %p71 = por %p69, %p70
      %p72 = scmp.ne.s32.totalorder %s61, %s64
      %p73 = scmp.eq.s32.totalorder %s17, 1
      %p74 = por %p72, %p73
      %p75 = scmp.ne.s32.totalorder %s64, %s65
      %p76 = scmp.eq.s32.totalorder %s17, 0
      %p77 = por %p75, %p76
      %p78 = scmp.ne.s32.totalorder %s64, %s65
      %p79 = scmp.eq.s32.totalorder %s18, 1
      %p80 = por %p78, %p79
      %p82 = scmp.ne.s32.totalorder %s65, %s81
      %p83 = scmp.eq.s32.totalorder %s18, 0
      %p84 = por %p82, %p83
      %s85 = ssub.s32 %s19, %s52
      %s86 = ssub.s32 %s22, %s40
      %s87 = sor.u32 %s85, %s86
      %s88 = ssub.s32 %s23, %s36
      %s89 = sor.u32 %s87, %s88
      %p90 = scmp.eq.s32.totalorder %s89, 0
      %s92 = sadd.s32 %s91, 1
      %s93 = scalar_select %p90, %s91, %s92
      %p96 = pneg %p90
      %p97 = scmp.eq.s32.totalorder %s12, 1
      %p98 = por %p96, %p97
      %p99 = scmp.ne.s32.totalorder %s91, %s94
      %p100 = scmp.eq.s32.totalorder %s12, 0
      %p101 = por %p99, %p100
      %p102 = scmp.ne.s32.totalorder %s91, %s94
      %p103 = scmp.eq.s32.totalorder %s17, 1
      %p104 = por %p102, %p103
      %p105 = scmp.ne.s32.totalorder %s94, %s95
      %p106 = scmp.eq.s32.totalorder %s17, 0
      %p107 = por %p105, %p106
      %p108 = scmp.ne.s32.totalorder %s94, %s95
      %p109 = scmp.eq.s32.totalorder %s18, 1
      %p110 = por %p108, %p109
      %p112 = scmp.ne.s32.totalorder %s95, %s111
      %p113 = scmp.eq.s32.totalorder %s18, 0
      %p114 = por %p112, %p113
      %s115 = ssub.s32 %s19, %s52
      %s116 = ssub.s32 %s22, %s40
      %s117 = sor.u32 %s115, %s116
      %p118 = scmp.eq.s32.totalorder %s117, 0
      %s120 = sadd.s32 %s119, 1
      %s121 = scalar_select %p118, %s119, %s120
      %p124 = pneg %p118
      %p125 = scmp.eq.s32.totalorder %s12, 1
      %p126 = por %p124, %p125
      %p127 = scmp.ne.s32.totalorder %s119, %s122
      %p128 = scmp.eq.s32.totalorder %s12, 0
      %p129 = por %p127, %p128
      %p130 = scmp.ne.s32.totalorder %s119, %s122
      %p131 = scmp.eq.s32.totalorder %s17, 1
      %p132 = por %p130, %p131
      %p133 = scmp.ne.s32.totalorder %s122, %s123
      %p134 = scmp.eq.s32.totalorder %s17, 0
      %p135 = por %p133, %p134
      %p136 = scmp.ne.s32.totalorder %s122, %s123
      %p137 = scmp.eq.s32.totalorder %s18, 1
      %p138 = por %p136, %p137
      %p140 = scmp.ne.s32.totalorder %s123, %s139
      %p141 = scmp.eq.s32.totalorder %s18, 0
      %p142 = por %p140, %p141
      %s143 = ssub.s32 %s20, %s48
      %s144 = ssub.s32 %s19, %s52
      %s145 = sor.u32 %s143, %s144
      %s146 = ssub.s32 %s22, %s40
      %s147 = sor.u32 %s145, %s146
      %s148 = ssub.s32 %s21, %s44
      %s149 = sor.u32 %s147, %s148
      %p150 = scmp.eq.s32.totalorder %s149, 0
      %s152 = sadd.s32 %s151, 1
      %s153 = scalar_select %p150, %s151, %s152
      %p156 = pneg %p150
      %p157 = scmp.eq.s32.totalorder %s12, 1
      %p158 = por %p156, %p157
      %p159 = scmp.ne.s32.totalorder %s151, %s154
      %p160 = scmp.eq.s32.totalorder %s12, 0
      %p161 = por %p159, %p160
      %p162 = scmp.ne.s32.totalorder %s151, %s154
      %p163 = scmp.eq.s32.totalorder %s17, 1
      %p164 = por %p162, %p163
      %p165 = scmp.ne.s32.totalorder %s154, %s155
      %p166 = scmp.eq.s32.totalorder %s17, 0
      %p167 = por %p165, %p166
      %p168 = scmp.ne.s32.totalorder %s154, %s155
      %p169 = scmp.eq.s32.totalorder %s18, 1
      %p170 = por %p168, %p169
      %p172 = scmp.ne.s32.totalorder %s155, %s171
      %p173 = scmp.eq.s32.totalorder %s18, 0
      %p174 = por %p172, %p173
      %p175 = scmp.le.s32.totalorder 1, %s12
      %p176 = scmp.lt.s32.totalorder %s12, 3
      %p177 = pnand %p175, %p176
      %p178 = pneg %p177
      // Predicated region
      $region9: #{tpu_custom_call.1} parent=5 // pred_check
        _
      $region10: #{tpu_custom_call.1} parent=5 // pred_check_branch
        %180 = sbr.rel (%p177) target = $region12
      $region11: #{tpu_custom_call.1} parent=5 // pred_region
        %s181 = ssub.s32 %s12, 1
        // Predicated region
        $region13: #{tpu_custom_call.1} parent=11 // pred_check
          %p182 = pneg %p107
        $region14: #{tpu_custom_call.1} parent=11 // pred_check_branch
          %184 = sbr.rel (%p182) target = $region16
        $region15: #{tpu_custom_call.1} parent=11 // pred_region
          %p185 = scmp.lt.s32.totalorder %s24, 0
          %s186 = scalar_select %p185, %s24, 0
          %p187 = scmp.lt.s32.totalorder %s27, 0
          %s188 = scalar_select %p187, %s27, 0
          %p189 = scmp.lt.s32.totalorder %s28, 0
          %s190 = scalar_select %p189, %s28, 0
          %s191 = sadd.s32 %s190, %s188
          %s192 = sadd.s32 %s191, %s186
          %s193 = smul.addr %s192, 4
          %s194 = scalar_lea.vmem %s1, %s193
        $region16: #{tpu_custom_call.1} parent=11 // pred_fallthru
          _
        // Predicated region
        $region17: #{tpu_custom_call.1} parent=11 // pred_check
          %p195 = pneg %p135
        $region18: #{tpu_custom_call.1} parent=11 // pred_check_branch
          %197 = sbr.rel (%p195) target = $region20
        $region19: #{tpu_custom_call.1} parent=11 // pred_region
          %p198 = scmp.lt.s32.totalorder %s24, 0
          %s199 = scalar_select %p198, %s24, 0
          %p200 = scmp.lt.s32.totalorder %s27, 0
          %s201 = scalar_select %p200, %s27, 0
          %s202 = sadd.s32 %s201, %s199
          %s203 = smul.addr %s202, 8
          %s204 = scalar_lea.vmem %s2, %s203
        $region20: #{tpu_custom_call.1} parent=11 // pred_fallthru
          _
      $region12: #{tpu_custom_call.1} parent=5 // pred_fallthru
        _
      %p205 = scmp.lt.s32.totalorder %s12, 2
      // Predicated region
      $region21: #{tpu_custom_call.1} parent=5 // pred_check
        %p206 = pneg %p205
      $region22: #{tpu_custom_call.1} parent=5 // pred_check_branch
        %208 = sbr.rel (%p206) target = $region24
      $region23: #{tpu_custom_call.1} parent=5 // pred_region
        // Predicated region
        $region25: #{tpu_custom_call.1} parent=23 // pred_check
          %p209 = pneg %p71
        $region26: #{tpu_custom_call.1} parent=23 // pred_check_branch
          %211 = sbr.rel (%p209) target = $region28
        $region27: #{tpu_custom_call.1} parent=23 // pred_region
          %s212 = smul.u32 5, %s23
          %s213 = smul.u32 2, %s21
          %p214 = scmp.lt.s32.totalorder %s20, 1
          %s215 = scalar_select %p214, %s20, 1
          %p216 = scmp.lt.s32.totalorder %s19, 0
          %s217 = scalar_select %p216, %s19, 0
          %p218 = scmp.lt.s32.totalorder %s212, 4
          %s219 = scalar_select %p218, %s212, 4
          %p220 = scmp.lt.s32.totalorder %s213, 1
          %s221 = scalar_select %p220, %s213, 1
          %s222 = smul.addr %s219, 2
          %s223 = sadd.s32 %s221, %s222
          %s224 = smul.addr %s217, 10
          %s225 = sadd.s32 %s223, %s224
          %s226 = smul.addr %s215, 10
          %s227 = sadd.s32 %s225, %s226
          %s228 = smul.addr %s227, 4
          %s229 = scalar_lea.vmem %s0, %s228
          %s230 = smul.u32 5, %s23
          %s231 = smul.u32 2, %s21
        $region28: #{tpu_custom_call.1} parent=23 // pred_fallthru
          _
      $region24: #{tpu_custom_call.1} parent=5 // pred_fallthru
        _
      %p232 = scmp.le.s32.totalorder 1, %s12
      %p233 = scmp.lt.s32.totalorder %s12, 3
      %p234 = pnand %p232, %p233
      %p235 = pneg %p234
      // Predicated region
      $region29: #{tpu_custom_call.1} parent=5 // pred_check
        _
      $region30: #{tpu_custom_call.1} parent=5 // pred_check_branch
        %237 = sbr.rel (%p234) target = $region32
      $region31: #{tpu_custom_call.1} parent=5 // pred_region
        %s238 = ssub.s32 %s12, 1
        %s239 = smul.u32 5, %s28
        %s240 = smul.u32 2, %s26
        %p241 = scmp.lt.s32.totalorder %s25, 1
        %s242 = scalar_select %p241, %s25, 1
        %p243 = scmp.lt.s32.totalorder %s24, 0
        %s244 = scalar_select %p243, %s24, 0
        %p245 = scmp.lt.s32.totalorder %s239, 4
        %s246 = scalar_select %p245, %s239, 4
        %p247 = scmp.lt.s32.totalorder %s240, 1
        %s248 = scalar_select %p247, %s240, 1
        %s249 = smul.addr %s246, 2
        %s250 = sadd.s32 %s248, %s249
        %s251 = smul.addr %s244, 10
        %s252 = sadd.s32 %s250, %s251
        %s253 = smul.addr %s242, 10
        %s254 = sadd.s32 %s252, %s253
        %s255 = smul.addr %s254, 4
        %s256 = scalar_lea.vmem %s0, %s255
        %p257 = pneg %p77
        %p258 = pneg %p74
        %p259 = scmp.lt.s32.totalorder %s24, 0
        %s260 = scalar_select %p259, %s24, 0
        %p261 = scmp.lt.s32.totalorder %s27, 0
        %s262 = scalar_select %p261, %s27, 0
        %p263 = scmp.lt.s32.totalorder %s28, 0
        %s264 = scalar_select %p263, %s28, 0
        %s265 = sadd.s32 %s264, %s262
        %s266 = sadd.s32 %s265, %s260
        %s267 = smul.addr %s266, 4
        %s268 = scalar_lea.vmem %s1, %s267
        %p269 = pneg %p107
        %p270 = pneg %p104
        %p271 = scmp.lt.s32.totalorder %s24, 0
        %s272 = scalar_select %p271, %s24, 0
        %p273 = scmp.lt.s32.totalorder %s27, 0
        %s274 = scalar_select %p273, %s27, 0
        %s275 = sadd.s32 %s274, %s272
        %s276 = smul.addr %s275, 8
        %s277 = scalar_lea.vmem %s2, %s276
        %p278 = pneg %p135
        %p279 = pneg %p132
        %p280 = pneg %p167
        %p281 = pneg %p164
        %s282 = sand.u32 %s154, 1
        %s283 = scalar_lea.sflag [#allocation3], %s282
        %s284 = sand.u32 %s154, 1
        %s285 = smul.addr %s284, 16
        %s286 = scalar_lea.vmem [#allocation2], %s285
        %s287 = smul.u32 5, %s28
        %s288 = smul.u32 2, %s26
        %p289 = scmp.lt.s32.totalorder %s25, 1
        %s290 = scalar_select %p289, %s25, 1
        %p291 = scmp.lt.s32.totalorder %s24, 0
        %s292 = scalar_select %p291, %s24, 0
        %p293 = scmp.lt.s32.totalorder %s287, 4
        %s294 = scalar_select %p293, %s287, 4
        %p295 = scmp.lt.s32.totalorder %s288, 1
        %s296 = scalar_select %p295, %s288, 1
        %s297 = smul.addr %s294, 2
        %s298 = sadd.s32 %s296, %s297
        %s299 = smul.addr %s292, 10
        %s300 = sadd.s32 %s298, %s299
        %s301 = smul.addr %s290, 10
        %s302 = sadd.s32 %s300, %s301
        %s303 = smul.addr %s302, 4
        %s304 = scalar_lea.vmem %s0, %s303
        %s305 = smul.u32 5, %s28
        %s306 = smul.u32 2, %s26
        %p307 = scmp.lt.s32.totalorder %s24, 0
        %s308 = scalar_select %p307, %s24, 0
        %p309 = scmp.lt.s32.totalorder %s27, 0
        %s310 = scalar_select %p309, %s27, 0
        %p311 = scmp.lt.s32.totalorder %s28, 0
        %s312 = scalar_select %p311, %s28, 0
        %s313 = sadd.s32 %s312, %s310
        %s314 = sadd.s32 %s313, %s308
        %s315 = smul.addr %s314, 4
        %s316 = scalar_lea.vmem %s1, %s315
        %p317 = scmp.lt.s32.totalorder %s24, 0
        %s318 = scalar_select %p317, %s24, 0
        %p319 = scmp.lt.s32.totalorder %s27, 0
        %s320 = scalar_select %p319, %s27, 0
        %s321 = sadd.s32 %s320, %s318
        %s322 = smul.addr %s321, 8
        %s323 = scalar_lea.vmem %s2, %s322
        %s324 = smul.u32 2, %s26
        %v326 = vld [vmem:[%s316] sm:$0xf]
        %v327 = vld [vmem:[%s304] sm:$0xff]
        %v328 = vld [vmem:[%s304 + $0x8] sm:$0xff]
        %v329 = vld [vmem:[%s304 + $0x10] sm:$0xff]
        %v330 = vld [vmem:[%s304 + $0x18] sm:$0xff]
        %v331 = vld [vmem:[%s304 + $0x20] sm:$0x33]
        %v332 = vld [vmem:[%s323] sm:$0xff]
        %334 = vset.pattern.permute.xlu0 0
        %335 = vperm.xlu0 %334, %v332
        %v336 = vpop.permute.xlu0 %335
        %v343 = vunpack.c.l.b16 %v327
        %v344 = vunpack.c.h.b16 %v327
        %v345 = vunpack.c.l.b16 %v328
        %v346 = vunpack.c.h.b16 %v328
        %v347 = vunpack.c.l.b16 %v329
        %v348 = vunpack.c.h.b16 %v329
        %v349 = vunpack.c.l.b16 %v330
        %v350 = vunpack.c.h.b16 %v330
        %v351 = vunpack.c.l.b16 %v331
        %v352 = vunpack.c.h.b16 %v331
        %v353 = vpack.c.b16 %v345, %v343
        %v354 = vpack.c.b16 %v346, %v344
        %v355 = vpack.c.b16 %v349, %v347
        %v356 = vpack.c.b16 %v350, %v348
        %v357 = vpack.c.b16 %v351, %v351
        %v358 = vpack.c.b16 %v352, %v352
        %vm363 = vcmask 293888
        %v365 = vsel %vm363, %v326, 0
        %vm367 = vcmask 1041408
        %v369 = vsel %vm367, %v357, 0
        %v372 = vsel %vm367, %v358, 0
        %374 = vmatprep.subr.bf16.mxu0 %v354
        %375 = vmatpush1.bf16.msra.mxu0 %v353
        %376 = vmatprep.subr.bf16.mxu0 %v356
        %377 = vmatpush1.bf16.msra.mxu0 %v355
        %378 = vmatprep.subr.bf16.mxu0 %v372
        %379 = vmatpush1.bf16.msra.mxu0 %v369
        %380 = vmatprep.subr.bf16.mxu0 0
        %381 = vmatpush1.bf16.msra.mxu0 0
        %382 = vmatprep.subr.bf16.mxu0 0
        %383 = vmatpush1.bf16.msra.mxu0 0
        %384 = vmatprep.subr.bf16.mxu0 0
        %385 = vmatpush1.bf16.msra.mxu0 0
        %386 = vmatprep.subr.bf16.mxu0 0
        %387 = vmatpush1.bf16.msra.mxu0 0
        %388 = vmatprep.subr.bf16.mxu0 0
        %389 = vmatpush1.bf16.msra.mxu0 0
        %390 = vmatprep.subr.bf16.mxu0 0
        %391 = vmatpush1.bf16.msra.mxu0 0
        %392 = vmatprep.subr.bf16.mxu0 0
        %393 = vmatpush1.bf16.msra.mxu0 0
        %394 = vmatprep.subr.bf16.mxu0 0
        %395 = vmatpush1.bf16.msra.mxu0 0
        %396 = vmatprep.subr.bf16.mxu0 0
        %397 = vmatpush1.bf16.msra.mxu0 0
        %398 = vmatprep.subr.bf16.mxu0 0
        %399 = vmatpush1.bf16.msra.mxu0 0
        %400 = vmatprep.subr.bf16.mxu0 0
        %401 = vmatpush1.bf16.msra.mxu0 0
        %402 = vmatprep.subr.bf16.mxu0 0
        %403 = vmatpush1.bf16.msra.mxu0 0
        %404 = vmatprep.subr.bf16.mxu0 0
        %405 = vmatpush1.bf16.msra.mxu0 0
        %406 = vmatprep.mubr.bf16.mxu0 0
        %407 = vmatmul.mubr.bf16.gmra.mrb[0].mxu0 %v365
        %v408 = vpop.f32.mrb[0].mxu0
        %v409 = vadd.f32 %v336, %v408
        %v410 = vpop.f32.mrb[0].mxu0
        %v411 = vadd.f32 %v336, %v410
        %v412 = vpop.f32.mrb[0].mxu0
        %v413 = vpop.f32.mrb[0].mxu0
        %414 = vdwg.mxu0
        %415 = vst [vmem:[%s286] sm:$0xff] %v409
        %416 = vst [vmem:[%s286 + $0x8] sm:$0xff] %v411
        %s417 = sand.u32 %s154, 1
        %s418 = scalar_lea.sflag [#allocation3], %s417
        %s419 = sand.u32 %s154, 1
        %s420 = smul.addr %s419, 16
        %s421 = scalar_lea.vmem [#allocation2], %s420
        // Predicated region
        $region33: #{tpu_custom_call.1} parent=31 // pred_check
          %p422 = pneg %p164
        $region34: #{tpu_custom_call.1} parent=31 // pred_check_branch
          %424 = sbr.rel (%p422) target = $region36
        $region35: #{tpu_custom_call.1} parent=31 // pred_region
          %s425 = smul.u32 2, %s26
          %s427 = ssub.s32 256, 256
          %428 = vsyncadd %s418, %s427
          %s429 = smul.addr %s27, 2
          %s430 = sadd.s32 %s425, %s429
          %s431 = smul.addr %s24, 2
          %s432 = sadd.s32 %s430, %s431
          %s433 = smul.addr %s25, 2
          %s434 = sadd.s32 %s432, %s433
          %s435 = smul.addr %s434, 128
          %s436 = scalar_lea.hbm %s3, %s435
          %s438 = sshll.u32 %s421, 4
          %s439 = int_to_ptr.vmem [resolvable:$true] %s438
          %441 = dma.vmem_to_hbm [thread:$0]  %s439, 256, %s436, %s418
        $region36: #{tpu_custom_call.1} parent=31 // pred_fallthru
          _
      $region32: #{tpu_custom_call.1} parent=5 // pred_fallthru
        _
      %p442 = scmp.le.s32.totalorder 2, %s12
      // Predicated region
      $region37: #{tpu_custom_call.1} parent=5 // pred_check
        %p443 = pneg %p442
      $region38: #{tpu_custom_call.1} parent=5 // pred_check_branch
        %445 = sbr.rel (%p443) target = $region40
      $region39: #{tpu_custom_call.1} parent=5 // pred_region
        %s446 = ssub.s32 %s12, 2
        // Predicated region
        $region41: #{tpu_custom_call.1} parent=39 // pred_check
          %p447 = pneg %p170
        $region42: #{tpu_custom_call.1} parent=39 // pred_check_branch
          %449 = sbr.rel (%p447) target = $region44
        $region43: #{tpu_custom_call.1} parent=39 // pred_region
          %s450 = sand.u32 %s155, 1
          %s451 = scalar_lea.sflag [#allocation3], %s450
          %s452 = sand.u32 %s155, 1
          %s453 = smul.addr %s452, 16
          %s454 = scalar_lea.vmem [#allocation2], %s453
          %455 = dma.done %s451, 256
        $region44: #{tpu_custom_call.1} parent=39 // pred_fallthru
          _
      $region40: #{tpu_custom_call.1} parent=5 // pred_fallthru
        _
    $region6: #{tpu_custom_call.1} parent=1 // loop_footer
      %s16 = sadd.s32 1, %s12
    $region7: #{tpu_custom_call.1} parent=1 // loop_footer_branch
      %11 = sbr.rel target = $region3
    $region8: #{tpu_custom_call.1} parent=1 // loop_exit
      _
    %456 = vsyncpa [#allocation3], 1
    %s457 = scalar_lea.sflag [#allocation3], 1
    %458 = vsyncpa %s457, 1

</llo_original>
